<compile_context>
chip_gen: v7x
topology: tpu7x:2x2x1
jax: 0.10.0
libtpu: 0.0.40
codegen_flags: <defaults>
</compile_context>

<pallas_src>
import jax
import jax.numpy as jnp
from jax.experimental import pallas as pl
from jax.experimental.pallas import tpu as pltpu


def _input_dropout_kernel(x_ref, scale_ref, o_ref):
    """One (bm, d) full-row tile: o = x * per_row_scale (scale is 0 or 1/keep_prob)."""
    o_ref[...] = x_ref[...] * scale_ref[...]


def _sublane_pack(dtype) -> int:
    size = jnp.dtype(dtype).itemsize
    if size >= 4:
        return 8
    if size == 2:
        return 16
    return 32


# Per-buffer tile-byte target.  With BlockSpec double buffering of input and
# output this keeps the pipeline footprint around ~8-9 MiB, safe under the
# default scoped VMEM on v5e (16 MiB), v6e (32 MiB) and v7x (32 MiB).
_TILE_BUDGET_BYTES = 2 * 1024 * 1024


def input_dropout(x, keep_prob, key, *, training=True, block_rows=None,
                  force_pallas=False):
    """Pallas implementation of InputDropout.forward.

    Rows (dim 0) are kept with probability `keep_prob`; dropped rows are zeroed
    and kept rows are rescaled by 1/keep_prob.  Eval mode is identity.

    `block_rows`, if given, is used as the row-tile size (rounded down to the
    dtype's sublane packing, minimum 8/16/32 for f32/bf16/int8 — note the
    rounding, so very small values are promoted).
    """
    if not training:
        return x  # matches the PyTorch eval branch

    assert 0.0 < keep_prob <= 1.0, "keep_prob must be in (0, 1]"

    n, d = x.shape

    # Per-row uniforms, mirroring torch: keep row iff floor(keep_prob + u) >= 1,
    # i.e. u >= 1 - keep_prob (keep with probability keep_prob).  Fuse mask and
    # rescale into one per-row factor, already in x.dtype so the kernel does a
    # single multiply per element with no per-tile cast.
    u = jax.random.uniform(key, (n,), dtype=jnp.float32)
    keep = (jnp.float32(keep_prob) + u) >= 1.0
    scale = jnp.where(keep, jnp.float32(1.0 / keep_prob), jnp.float32(0.0))
    scale = scale.astype(x.dtype).reshape(n, 1)

    # ---- Tile selection: full-row tiles (bd = d), bm from the VMEM budget ----
    sub = _sublane_pack(x.dtype)
    itemsize = jnp.dtype(x.dtype).itemsize
    row_bytes = max(d * itemsize, 1)

    if block_rows is not None:
        bm = min(int(block_rows), n)
    else:
        bm = min(n, max(sub, _TILE_BUDGET_BYTES // row_bytes))
    if bm < n:
        # Blocks that don't span the full row dim must satisfy sublane packing.
        bm = max(sub, (bm // sub) * sub)

    # Small-problem gate: a (1,)-step grid is dominated by launch/step overhead;
    # XLA's fused elementwise loop matches or beats the kernel there.
    if bm >= n and not force_pallas:
        return x * scale

    grid = (pl.cdiv(n, bm),)

    return pl.pallas_call(
        _input_dropout_kernel,
        out_shape=jax.ShapeDtypeStruct((n, d), x.dtype),
        grid_spec=pltpu.PrefetchScalarGridSpec(
            num_scalar_prefetch=0,
            grid=grid,
            in_specs=[
                # Full-row x tile: contiguous HBM bursts, no ragged column tiles.
                pl.BlockSpec((bm, d), lambda i: (i, 0)),
                # Per-row scale column for the same row block.
                pl.BlockSpec((bm, 1), lambda i: (i, 0)),
            ],
            out_specs=pl.BlockSpec((bm, d), lambda i: (i, 0)),
        ),
        compiler_params=pltpu.CompilerParams(
            # Fully independent row blocks: lets multi-TC chips shard the grid.
            dimension_semantics=("parallel",),
        ),
    )(x, scale)


def _check_rows(out, x, keep_prob, tol=1e-5):
    """Every row must be all-zero (dropped) or exactly x / keep_prob (kept)."""
    row_is_zero = jnp.all(out == 0.0, axis=1)
    row_is_scaled = jnp.all(jnp.abs(out - x / keep_prob) < tol, axis=1)
    return bool(jnp.all(row_is_zero | row_is_scaled))


if __name__ == "__main__":
    keep_prob = 0.7
    key = jax.random.PRNGKey(0)
    x_key, mask_key, x2_key, mask2_key = jax.random.split(key, 4)

    # ML-100k-style autoencoder input: (num_rows, num_features), small shape.
    x = jax.random.normal(x_key, (96, 256), dtype=jnp.float32)
    out = jax.block_until_ready(
        input_dropout(x, keep_prob, mask_key, training=True, force_pallas=True)
    )
    assert _check_rows(out, x, keep_prob), "row dropout semantics violated"

    # The small-input JAX fallback must agree with the Pallas path (same key).
    out_fb = jax.block_until_ready(
        input_dropout(x, keep_prob, mask_key, training=True, force_pallas=False)
    )
    assert bool(jnp.all(jnp.abs(out - out_fb) < 1e-6)), "fallback/Pallas mismatch"

    # Eval mode is identity.
    out_eval = jax.block_until_ready(
        input_dropout(x, keep_prob, mask_key, training=False)
    )
    assert bool(jnp.all(out_eval == x))

    # Multi-tile grid with ragged sizes: 80 rows at bm=32 -> 3 row blocks
    # (last one partial), d=250 (not a multiple of 128) exercised as a
    # full-extent last dim.  Same row mask must apply to the whole row.
    x2 = jax.random.normal(x2_key, (80, 250), dtype=jnp.float32)
    out2 = jax.block_until_ready(
        input_dropout(x2, keep_prob, mask2_key, training=True,
                      block_rows=32, force_pallas=True)
    )
    assert _check_rows(out2, x2, keep_prob), "multi-tile row mask mismatch"

    print("KERNEL_OK")
</pallas_src>

<mosaic_0001>
module attributes {stable_mosaic.version = 11 : i64} {
  func.func @_input_dropout_kernel(%arg0: i32, %arg1: memref<96x256xf32, #tpu.memory_space<vmem>>, %arg2: memref<96x1xf32, #tpu.memory_space<vmem>>, %arg3: memref<96x256xf32, #tpu.memory_space<vmem>>) attributes {dimension_semantics = [#tpu.dimension_semantics<parallel>], iteration_bounds = array<i64: 1>, scalar_prefetch = 0 : i64, scratch_operands = 0 : i64, tpu.core_type = #tpu.core_type<tc>, window_params = [{transform_indices = @transform_0, window_bounds = array<i64: 96, 256>}, {transform_indices = @transform_1, window_bounds = array<i64: 96, 1>}, {transform_indices = @transform_2, window_bounds = array<i64: 96, 256>}]} {
    %c0 = arith.constant 0 : index
    %c0_0 = arith.constant 0 : index
    %0 = vector.load %arg1[%c0, %c0_0] : memref<96x256xf32, #tpu.memory_space<vmem>>, vector<96x256xf32>
    %c0_1 = arith.constant 0 : index
    %c0_2 = arith.constant 0 : index
    %1 = vector.load %arg2[%c0_1, %c0_2] : memref<96x1xf32, #tpu.memory_space<vmem>>, vector<96x1xf32>
    %2 = vector.broadcast %1 : vector<96x1xf32> to vector<96x256xf32>
    %3 = arith.mulf %0, %2 : vector<96x256xf32>
    %c0_3 = arith.constant 0 : index
    %c0_4 = arith.constant 0 : index
    %4 = vector.load %arg3[%c0_3, %c0_4] : memref<96x256xf32, #tpu.memory_space<vmem>>, vector<96x256xf32>
    tpu.vector_store %arg3[%c0_3, %c0_4], %3 {strides = array<i32>} : memref<96x256xf32, #tpu.memory_space<vmem>>, vector<96x256xf32>,
    return
  }
  func.func @transform_0(%arg0: i32) -> (i32, i32) {
    %c0_i32 = arith.constant 0 : i32
    %c0_i32_0 = arith.constant 0 : i32
    return %arg0, %c0_i32 : i32, i32
  }
  func.func @transform_1(%arg0: i32) -> (i32, i32) {
    %c0_i32 = arith.constant 0 : i32
    %c0_i32_0 = arith.constant 0 : i32
    return %arg0, %c0_i32 : i32, i32
  }
  func.func @transform_2(%arg0: i32) -> (i32, i32) {
    %c0_i32 = arith.constant 0 : i32
    %c0_i32_0 = arith.constant 0 : i32
    return %arg0, %c0_i32 : i32, i32
  }
}

</mosaic_0001>

<llo_original>
// kernel: tpu_custom_call.1
$region0: #{tpu_custom_call.1}
  #allocation0 [shape = 'u32[]', space=smem, size = 0x4, offset = 0x4, fixed_abs, tag = 'smem constant byte address 0x4 - core index']
  #allocation1 [shape = 'u32[144,128]{1,0:T(1,128)}', space=vmem, size = 0x12000, scoped, tag = 'internal scratch']
  %s0 = inlined_call_operand.hbm [shape: f32[96,256], index: 0, kind: input, shape index: {}]
  %s1 = inlined_call_operand.vmem [shape: f32[96,1], index: 1, kind: input, shape index: {}]
  %s2 = inlined_call_operand.hbm [shape: f32[96,256], index: 2, kind: output, shape index: {}]
  %s3 = sld [smem:[#allocation0]]
  $region22: #{tpu_custom_call.1} parent=0
    _
  %s5 = ssub.s32 1, %s3
  %s6 = scalar_select 0, %s5, %s3
  $region1: #{tpu_custom_call.1} parent=0
    #allocation2 [shape = 'u8[98304]{0}', space=vmem, size = 0x18000, scoped, tag = 'input window, operand 0, single buffered']
    #allocation3 [shape = 's32[1]{0}', space=sflag, size = 0x4, scoped, tag = 'scoped memory for tpu_custom_call.1']
    #allocation4 [shape = 's32[1]{0}', space=sflag, size = 0x4, scoped, tag = 'scoped memory for tpu_custom_call.1']
    #allocation5 [shape = 'u8[98304]{0}', space=vmem, size = 0x18000, scoped, tag = 'output window, operand 0, single buffered']
    %7 = vsyncpa [#allocation3], 0
    %8 = vsyncpa [#allocation4], 0
    // Predicated region
    $region2: #{tpu_custom_call.1} parent=1 // pred_check
      _
    $region3: #{tpu_custom_call.1} parent=1 // pred_check_branch
      %10 = sbr.rel (0) target = $region5
    $region4: #{tpu_custom_call.1} parent=1 // pred_region
      %s12 = ssub.s32 3072, 3072
      %13 = vsyncadd [#allocation3], %s12
      %s14 = sshll.u32 [#allocation2], 4
      %s15 = int_to_ptr.vmem [resolvable:$true] %s14
      %20 = dma.hbm_to_vmem [thread:$0]  %s0, 3072, %s15, [#allocation3], 256, 256, 16
    $region5: #{tpu_custom_call.1} parent=1 // pred_fallthru
      _
    // Predicated region
    $region6: #{tpu_custom_call.1} parent=1 // pred_check
      _
    $region7: #{tpu_custom_call.1} parent=1 // pred_check_branch
      %22 = sbr.rel (0) target = $region9
    $region8: #{tpu_custom_call.1} parent=1 // pred_region
      _
    $region9: #{tpu_custom_call.1} parent=1 // pred_fallthru
      _
    // Predicated region
    $region10: #{tpu_custom_call.1} parent=1 // pred_check
      _
    $region11: #{tpu_custom_call.1} parent=1 // pred_check_branch
      %24 = sbr.rel (0) target = $region13
    $region12: #{tpu_custom_call.1} parent=1 // pred_region
      %25 = dma.done [#allocation3], 3072
    $region13: #{tpu_custom_call.1} parent=1 // pred_fallthru
      _
    %v26 = vld [vmem:[#allocation2] sm:$0xff]
    %v27 = vld [vmem:[#allocation2 + $0x8] sm:$0xff]
    %v28 = vld [vmem:[#allocation2 + $0x10] sm:$0xff]
    %v29 = vld [vmem:[#allocation2 + $0x18] sm:$0xff]
    %v30 = vld [vmem:[#allocation2 + $0x20] sm:$0xff]
    %v31 = vld [vmem:[#allocation2 + $0x28] sm:$0xff]
    %v32 = vld [vmem:[#allocation2 + $0x30] sm:$0xff]
    %v33 = vld [vmem:[#allocation2 + $0x38] sm:$0xff]
    %v34 = vld [vmem:[#allocation2 + $0x40] sm:$0xff]
    %v35 = vld [vmem:[#allocation2 + $0x48] sm:$0xff]
    %v36 = vld [vmem:[#allocation2 + $0x50] sm:$0xff]
    %v37 = vld [vmem:[#allocation2 + $0x58] sm:$0xff]
    %v38 = vld [vmem:[#allocation2 + $0x60] sm:$0xff]
    %v39 = vld [vmem:[#allocation2 + $0x68] sm:$0xff]
    %v40 = vld [vmem:[#allocation2 + $0x70] sm:$0xff]
    %v41 = vld [vmem:[#allocation2 + $0x78] sm:$0xff]
    %v42 = vld [vmem:[#allocation2 + $0x80] sm:$0xff]
    %v43 = vld [vmem:[#allocation2 + $0x88] sm:$0xff]
    %v44 = vld [vmem:[#allocation2 + $0x90] sm:$0xff]
    %v45 = vld [vmem:[#allocation2 + $0x98] sm:$0xff]
    %v46 = vld [vmem:[#allocation2 + $0xa0] sm:$0xff]
    %v47 = vld [vmem:[#allocation2 + $0xa8] sm:$0xff]
    %v48 = vld [vmem:[#allocation2 + $0xb0] sm:$0xff]
    %v49 = vld [vmem:[#allocation2 + $0xb8] sm:$0xff]
    %v50 = vld [vmem:[%s1] sm:$0xff]
    %v51 = vld [vmem:[%s1 + $0x8] sm:$0xff]
    %v52 = vld [vmem:[%s1 + $0x10] sm:$0xff]
    %v53 = vld [vmem:[%s1 + $0x18] sm:$0xff]
    %v54 = vld [vmem:[%s1 + $0x20] sm:$0xff]
    %v55 = vld [vmem:[%s1 + $0x28] sm:$0xff]
    %v56 = vld [vmem:[%s1 + $0x30] sm:$0xff]
    %v57 = vld [vmem:[%s1 + $0x38] sm:$0xff]
    %v58 = vld [vmem:[%s1 + $0x40] sm:$0xff]
    %v59 = vld [vmem:[%s1 + $0x48] sm:$0xff]
    %v60 = vld [vmem:[%s1 + $0x50] sm:$0xff]
    %v61 = vld [vmem:[%s1 + $0x58] sm:$0xff]
    %63 = vset.pattern.permute.xlu0 0
    %64 = vperm.xlu0 %63, %v50
    %v65 = vpop.permute.xlu0 %64
    %68 = vset.pattern.permute.xlu0 0
    %69 = vperm.xlu0 %68, %v51
    %v70 = vpop.permute.xlu0 %69
    %73 = vset.pattern.permute.xlu0 0
    %74 = vperm.xlu0 %73, %v52
    %v75 = vpop.permute.xlu0 %74
    %78 = vset.pattern.permute.xlu0 0
    %79 = vperm.xlu0 %78, %v53
    %v80 = vpop.permute.xlu0 %79
    %83 = vset.pattern.permute.xlu0 0
    %84 = vperm.xlu0 %83, %v54
    %v85 = vpop.permute.xlu0 %84
    %88 = vset.pattern.permute.xlu0 0
    %89 = vperm.xlu0 %88, %v55
    %v90 = vpop.permute.xlu0 %89
    %93 = vset.pattern.permute.xlu0 0
    %94 = vperm.xlu0 %93, %v56
    %v95 = vpop.permute.xlu0 %94
    %98 = vset.pattern.permute.xlu0 0
    %99 = vperm.xlu0 %98, %v57
    %v100 = vpop.permute.xlu0 %99
    %103 = vset.pattern.permute.xlu0 0
    %104 = vperm.xlu0 %103, %v58
    %v105 = vpop.permute.xlu0 %104
    %108 = vset.pattern.permute.xlu0 0
    %109 = vperm.xlu0 %108, %v59
    %v110 = vpop.permute.xlu0 %109
    %113 = vset.pattern.permute.xlu0 0
    %114 = vperm.xlu0 %113, %v60
    %v115 = vpop.permute.xlu0 %114
    %118 = vset.pattern.permute.xlu0 0
    %119 = vperm.xlu0 %118, %v61
    %v120 = vpop.permute.xlu0 %119
    %v122 = vmul.f32 %v26, %v65
    %v123 = vmul.f32 %v27, %v65
    %v124 = vmul.f32 %v28, %v70
    %v125 = vmul.f32 %v29, %v70
    %v126 = vmul.f32 %v30, %v75
    %v127 = vmul.f32 %v31, %v75
    %v128 = vmul.f32 %v32, %v80
    %v129 = vmul.f32 %v33, %v80
    %v130 = vmul.f32 %v34, %v85
    %v131 = vmul.f32 %v35, %v85
    %v132 = vmul.f32 %v36, %v90
    %v133 = vmul.f32 %v37, %v90
    %v134 = vmul.f32 %v38, %v95
    %v135 = vmul.f32 %v39, %v95
    %v136 = vmul.f32 %v40, %v100
    %v137 = vmul.f32 %v41, %v100
    %v138 = vmul.f32 %v42, %v105
    %v139 = vmul.f32 %v43, %v105
    %v140 = vmul.f32 %v44, %v110
    %v141 = vmul.f32 %v45, %v110
    %v142 = vmul.f32 %v46, %v115
    %v143 = vmul.f32 %v47, %v115
    %v144 = vmul.f32 %v48, %v120
    %v145 = vmul.f32 %v49, %v120
    %146 = vst [vmem:[#allocation5] sm:$0xff] %v122
    %147 = vst [vmem:[#allocation5 + $0x8] sm:$0xff] %v123
    %148 = vst [vmem:[#allocation5 + $0x10] sm:$0xff] %v124
    %149 = vst [vmem:[#allocation5 + $0x18] sm:$0xff] %v125
    %150 = vst [vmem:[#allocation5 + $0x20] sm:$0xff] %v126
    %151 = vst [vmem:[#allocation5 + $0x28] sm:$0xff] %v127
    %152 = vst [vmem:[#allocation5 + $0x30] sm:$0xff] %v128
    %153 = vst [vmem:[#allocation5 + $0x38] sm:$0xff] %v129
    %154 = vst [vmem:[#allocation5 + $0x40] sm:$0xff] %v130
    %155 = vst [vmem:[#allocation5 + $0x48] sm:$0xff] %v131
    %156 = vst [vmem:[#allocation5 + $0x50] sm:$0xff] %v132
    %157 = vst [vmem:[#allocation5 + $0x58] sm:$0xff] %v133
    %158 = vst [vmem:[#allocation5 + $0x60] sm:$0xff] %v134
    %159 = vst [vmem:[#allocation5 + $0x68] sm:$0xff] %v135
    %160 = vst [vmem:[#allocation5 + $0x70] sm:$0xff] %v136
    %161 = vst [vmem:[#allocation5 + $0x78] sm:$0xff] %v137
    %162 = vst [vmem:[#allocation5 + $0x80] sm:$0xff] %v138
    %163 = vst [vmem:[#allocation5 + $0x88] sm:$0xff] %v139
    %164 = vst [vmem:[#allocation5 + $0x90] sm:$0xff] %v140
    %165 = vst [vmem:[#allocation5 + $0x98] sm:$0xff] %v141
    %166 = vst [vmem:[#allocation5 + $0xa0] sm:$0xff] %v142
    %167 = vst [vmem:[#allocation5 + $0xa8] sm:$0xff] %v143
    %168 = vst [vmem:[#allocation5 + $0xb0] sm:$0xff] %v144
    %169 = vst [vmem:[#allocation5 + $0xb8] sm:$0xff] %v145
    // Predicated region
    $region14: #{tpu_custom_call.1} parent=1 // pred_check
      _
    $region15: #{tpu_custom_call.1} parent=1 // pred_check_branch
      %171 = sbr.rel (0) target = $region17
    $region16: #{tpu_custom_call.1} parent=1 // pred_region
      %s173 = ssub.s32 3072, 3072
      %174 = vsyncadd [#allocation4], %s173
      %s175 = sshll.u32 [#allocation5], 4
      %s176 = int_to_ptr.vmem [resolvable:$true] %s175
      %181 = dma.vmem_to_hbm [thread:$0]  %s176, 3072, %s2, [#allocation4], 256, 256, 16
    $region17: #{tpu_custom_call.1} parent=1 // pred_fallthru
      _
    // Predicated region
    $region18: #{tpu_custom_call.1} parent=1 // pred_check
      _
    $region19: #{tpu_custom_call.1} parent=1 // pred_check_branch
      %183 = sbr.rel (0) target = $region21
    $region20: #{tpu_custom_call.1} parent=1 // pred_region
      %184 = dma.done [#allocation4], 3072
    $region21: #{tpu_custom_call.1} parent=1 // pred_fallthru
      _
    %185 = vsyncpa [#allocation3], 1
    %186 = vsyncpa [#allocation4], 1

</llo_original>
